<compile_context>
chip_gen: v5e
topology: v5e:2x2
jax: 0.10.0
libtpu: 0.0.40
codegen_flags: <defaults>
</compile_context>

<pallas_src>
import functools

import numpy as np
import jax
import jax.numpy as jnp
from jax.experimental import pallas as pl
from jax.experimental.pallas import tpu as pltpu


def _round_up(n, m):
    return (n + m - 1) // m * m


@functools.lru_cache(maxsize=None)
def _mxu_wants_bf16():
    # TPU v7x has no native f32 MXU path; feed it bf16 operands (f32 accumulation).
    try:
        kind = jax.devices()[0].device_kind.lower()
    except Exception:
        return False
    return "v7" in kind


@functools.lru_cache(maxsize=None)
def _ones_blockdiag_np(tn, win):
    """(tn*win, tn) block-diagonal ALL-ONES tile (exact in bf16); 1/win applied in-kernel."""
    w = np.zeros((tn * win, tn), np.float32)
    for i in range(tn):
        w[i * win:(i + 1) * win, i] = 1.0
    return w


@functools.lru_cache(maxsize=None)
def _adaptive_weight_np(L, S, Lp, Sp):
    """Dense (Lp, Sp) f32 matrix with PyTorch adaptive_avg_pool1d floor/ceil windows."""
    w = np.zeros((Lp, Sp), np.float32)
    for i in range(S):
        start = (i * L) // S
        end = -((-(i + 1) * L) // S)  # ceil((i+1)*L/S)
        w[start:end, i] = 1.0 / (end - start)
    return w


def _pick_tm(B, n_out_tiles, row_bytes, resident_bytes, budget=24 << 20):
    """Largest batch tile fitting ~24 MiB/step of VMEM while keeping enough total grid
    steps for megacore sharding + pipeline overlap (never shrinks below 128 rows just
    to manufacture steps -- that is where per-step fixed cost starts to dominate)."""
    budget = max(budget - resident_bytes, 1 << 20)
    desired_steps = min(4, pl.cdiv(B, 128) * max(n_out_tiles, 1))
    for cand in (2048, 1024, 512, 256, 128, 64, 32, 16, 8):
        tm = B if cand >= B else cand           # full-extent row block is always legal
        if tm * row_bytes > budget:
            continue
        if pl.cdiv(B, tm) * max(n_out_tiles, 1) >= desired_steps:
            return tm
    return min(8, B)


def _uniform_pool_kernel(x_ref, w_ref, o_ref, *, inv_win, compute_dtype):
    x = x_ref[...]
    if x.dtype != compute_dtype:
        x = x.astype(compute_dtype)              # in-kernel cast (VPU); HBM stays narrow
    acc = jnp.dot(x, w_ref[...], preferred_element_type=jnp.float32)
    o_ref[...] = (acc * inv_win).astype(o_ref.dtype)   # exact 1/win scale on the VPU


def _dense_pool_kernel(x_ref, w_ref, o_ref):
    @pl.when(pl.program_id(2) == 0)
    def _():
        o_ref[...] = jnp.zeros_like(o_ref)

    o_ref[...] += jnp.dot(x_ref[...].astype(jnp.float32), w_ref[...],
                          preferred_element_type=jnp.float32)


def _uniform_pool(x, B, L, S, win):
    x_dtype = x.dtype
    compute_dtype = (jnp.bfloat16
                     if (x_dtype == jnp.float32 and _mxu_wants_bf16())
                     else x_dtype)

    tn = 128 if S >= 128 else S
    n_j = pl.cdiv(S, tn)

    # Keep every x column block fully in-bounds: zero-pad the (rare) lane-unaligned case.
    # Row axis is never padded -- cdiv grid + masked write-back handles the ragged block.
    Lp = n_j * tn * win
    if Lp != L:
        x = jnp.pad(x, ((0, 0), (0, Lp - L)))

    w = jnp.asarray(_ones_blockdiag_np(tn, win), dtype=compute_dtype)

    x_item = x.dtype.itemsize
    w_item = jnp.dtype(compute_dtype).itemsize
    row_bytes = 2 * tn * win * x_item + 2 * tn * x_item      # x + out tiles, double buffered
    resident_bytes = 2 * tn * win * tn * w_item              # constant weight block
    tm = _pick_tm(B, n_j, row_bytes, resident_bytes)

    kernel = functools.partial(_uniform_pool_kernel,
                               inv_win=float(1.0 / win),
                               compute_dtype=compute_dtype)
    cost = pl.CostEstimate(
        flops=int(2 * B * S * tn * win),
        transcendentals=0,
        bytes_accessed=int(B * Lp * x_item + tn * win * tn * w_item + B * S * x_item),
    )
    return pl.pallas_call(
        kernel,
        out_shape=jax.ShapeDtypeStruct((B, S), x_dtype),
        grid=(pl.cdiv(B, tm), n_j),
        in_specs=[
            pl.BlockSpec((tm, tn * win), lambda i, j: (i, j)),
            pl.BlockSpec((tn * win, tn), lambda i, j: (0, 0)),   # DMA'd once, VMEM-resident
        ],
        out_specs=pl.BlockSpec((tm, tn), lambda i, j: (i, j)),
        compiler_params=pltpu.CompilerParams(
            dimension_semantics=("parallel", "parallel"),
            vmem_limit_bytes=32 * 1024 * 1024),
        cost_estimate=cost,
    )(x, w)


def _dense_pool(x, B, L, S):
    # Rare fallback (non-uniform adaptive windows).  Tiled dense matmul, K axis last,
    # accumulation directly in the resident f32 output block.
    tn = 128 if S >= 128 else S
    Sp = pl.cdiv(S, tn) * tn
    Lp = _round_up(L, 128)
    tk = 512 if Lp % 512 == 0 else (256 if Lp % 256 == 0 else 128)

    if Lp != L:
        x = jnp.pad(x, ((0, 0), (0, Lp - L)))        # zero K-pad; weight rows there are 0
    w = jnp.asarray(_adaptive_weight_np(L, S, Lp, Sp))

    x_item = x.dtype.itemsize
    row_bytes = 2 * tk * x_item + 2 * tn * 4
    resident_bytes = 2 * tk * tn * 4
    tm = _pick_tm(B, pl.cdiv(S, tn), row_bytes, resident_bytes)

    return pl.pallas_call(
        _dense_pool_kernel,
        out_shape=jax.ShapeDtypeStruct((B, S), jnp.float32),
        grid=(pl.cdiv(B, tm), pl.cdiv(S, tn), Lp // tk),
        in_specs=[
            pl.BlockSpec((tm, tk), lambda i, j, k: (i, k)),
            pl.BlockSpec((tk, tn), lambda i, j, k: (k, j)),
        ],
        out_specs=pl.BlockSpec((tm, tn), lambda i, j, k: (i, j)),
        compiler_params=pltpu.CompilerParams(
            dimension_semantics=("parallel", "parallel", "arbitrary"),
            vmem_limit_bytes=32 * 1024 * 1024),
    )(x, w)


@jax.jit
def _mean_mapper_impl(features):
    B = features.shape[0]
    orig_dtype = features.dtype
    x = features.reshape(B, -1)
    L = x.shape[1]
    S = L // 9
    if S < 1:
        raise ValueError("MeanMapper: flattened feature length must be >= 9")

    if L % S == 0:
        # Uniform adaptive windows (always true for PatchCore inputs: L = C * 3 * 3).
        return _uniform_pool(x, B, L, S, L // S)

    out = _dense_pool(x, B, L, S)
    if jnp.issubdtype(orig_dtype, jnp.floating) and out.dtype != orig_dtype:
        out = out.astype(orig_dtype)
    return out


def mean_mapper(features):
    """Pallas equivalent of MeanMapper.forward (output dim = flattened_len // 9)."""
    return _mean_mapper_impl(features)


if __name__ == "__main__":
    key = jax.random.PRNGKey(0)
    k1, k2 = jax.random.split(key)

    # PatchCore-style patch features: 8 patches, 32 channels, 3x3 neighborhood
    # -> flattened length 288, pooled output dim 288 // 9 = 32 (uniform fast path).
    x = jax.random.normal(k1, (8, 32, 3, 3), dtype=jnp.float32)
    out = jax.block_until_ready(mean_mapper(x))
    assert out.shape == (8, 32), out.shape
    ref = np.asarray(x).reshape(8, 32, 9).mean(axis=-1)
    # On v7x the f32 input goes through the bf16 MXU path -> loosen tolerance there.
    tol = 2e-2 if _mxu_wants_bf16() else 1e-5
    np.testing.assert_allclose(np.asarray(out), ref, rtol=tol, atol=tol)

    # bf16 input stays bf16 end-to-end (no wrapper upcast); f32 accumulation in-kernel.
    xb = x.astype(jnp.bfloat16)
    outb = jax.block_until_ready(mean_mapper(xb))
    assert outb.shape == (8, 32) and outb.dtype == jnp.bfloat16
    refb = np.asarray(xb.astype(jnp.float32)).reshape(8, 32, 9).mean(axis=-1)
    np.testing.assert_allclose(np.asarray(outb.astype(jnp.float32)), refb,
                               rtol=2e-2, atol=2e-2)

    # Non-uniform adaptive windows (L % (L // 9) != 0) exercise the dense fallback path.
    y = jax.random.normal(k2, (4, 100), dtype=jnp.float32)
    out2 = jax.block_until_ready(mean_mapper(y))
    L2, S2 = 100, 100 // 9
    assert out2.shape == (4, S2), out2.shape
    yn = np.asarray(y)
    ref2 = np.zeros((4, S2), np.float32)
    for i in range(S2):
        s = (i * L2) // S2
        e = -((-(i + 1) * L2) // S2)
        ref2[:, i] = yn[:, s:e].mean(axis=-1)
    np.testing.assert_allclose(np.asarray(out2), ref2, rtol=1e-5, atol=1e-5)

    print("KERNEL_OK")
</pallas_src>

<mosaic_0001>
module attributes {stable_mosaic.version = 11 : i64} {
  func.func @_uniform_pool_kernel(%arg0: i32, %arg1: i32, %arg2: memref<8x288xf32, #tpu.memory_space<vmem>>, %arg3: memref<288x32xf32, #tpu.memory_space<vmem>>, %arg4: memref<8x32xf32, #tpu.memory_space<vmem>>) attributes {dimension_semantics = [#tpu.dimension_semantics<parallel>, #tpu.dimension_semantics<parallel>], iteration_bounds = array<i64: 1, 1>, scalar_prefetch = 0 : i64, scratch_operands = 0 : i64, tpu.core_type = #tpu.core_type<tc>, window_params = [{transform_indices = @transform_0, window_bounds = array<i64: 8, 288>}, {pipeline_mode = #tpu.pipeline_mode<synchronous>, transform_indices = @transform_1, window_bounds = array<i64: 288, 32>}, {transform_indices = @transform_2, window_bounds = array<i64: 8, 32>}]} {
    %c0 = arith.constant 0 : index
    %c0_0 = arith.constant 0 : index
    %0 = vector.load %arg2[%c0, %c0_0] : memref<8x288xf32, #tpu.memory_space<vmem>>, vector<8x288xf32>
    %c0_1 = arith.constant 0 : index
    %c0_2 = arith.constant 0 : index
    %1 = vector.load %arg3[%c0_1, %c0_2] : memref<288x32xf32, #tpu.memory_space<vmem>>, vector<288x32xf32>
    %cst = arith.constant dense<0.000000e+00> : vector<8x32xf32>
    %2 = tpu.matmul %0, %1, %cst {dimension_numbers = #tpu.dot_dimension_numbers<[1], [0], [0], [1], [0, 0, 1, 1], [], []>} : vector<8x288xf32>, vector<288x32xf32>, vector<8x32xf32> -> vector<8x32xf32>
    %cst_3 = arith.constant 0.111111112 : f32
    %3 = vector.broadcast %cst_3 : f32 to vector<8x32xf32>
    %4 = arith.mulf %2, %3 : vector<8x32xf32>
    %c0_4 = arith.constant 0 : index
    %c0_5 = arith.constant 0 : index
    %5 = vector.load %arg4[%c0_4, %c0_5] : memref<8x32xf32, #tpu.memory_space<vmem>>, vector<8x32xf32>
    tpu.vector_store %arg4[%c0_4, %c0_5], %4 {strides = array<i32>} : memref<8x32xf32, #tpu.memory_space<vmem>>, vector<8x32xf32>,
    return
  }
  func.func @transform_0(%arg0: i32, %arg1: i32) -> (i32, i32) {
    %c0_i32 = arith.constant 0 : i32
    return %arg0, %arg1 : i32, i32
  }
  func.func @transform_1(%arg0: i32, %arg1: i32) -> (i32, i32) {
    %c0_i32 = arith.constant 0 : i32
    %c0_i32_0 = arith.constant 0 : i32
    %c0_i32_1 = arith.constant 0 : i32
    return %c0_i32, %c0_i32_0 : i32, i32
  }
  func.func @transform_2(%arg0: i32, %arg1: i32) -> (i32, i32) {
    %c0_i32 = arith.constant 0 : i32
    return %arg0, %arg1 : i32, i32
  }
}

</mosaic_0001>

<llo_original>
// kernel: _mean_mapper_impl.1
$region0: #{_mean_mapper_impl.1}
  #allocation0 [shape = 'u32[]', space=smem, size = 0x4, offset = 0x4, fixed_abs, tag = 'smem constant byte address 0x4 - core index']
  #allocation1 [shape = 'u32[72,128]{1,0:T(1,128)}', space=vmem, size = 0x9000, scoped, tag = 'internal scratch']
  %s0 = inlined_call_operand.vmem [shape: f32[8,288], index: 0, kind: input, shape index: {}]
  %s1 = inlined_call_operand.vmem [shape: f32[288,32], index: 1, kind: input, shape index: {}]
  %s2 = inlined_call_operand.hbm [shape: f32[8,32], index: 2, kind: output, shape index: {}]
  %s3 = sld [smem:[#allocation0]]
  $region18: #{_mean_mapper_impl.1} parent=0
    _
  %s5 = ssub.s32 1, %s3
  %s6 = scalar_select 0, %s5, %s3
  $region1: #{_mean_mapper_impl.1} parent=0
    #allocation2 [shape = 'u8[4096]{0}', space=vmem, size = 0x1000, scoped, tag = 'output window, operand 0, single buffered']
    #allocation3 [shape = 's32[1]{0}', space=sflag, size = 0x4, scoped, tag = 'scoped memory for _mean_mapper_impl.1']
    %7 = vsyncpa [#allocation3], 0
    // Predicated region
    $region2: #{_mean_mapper_impl.1} parent=1 // pred_check
      _
    $region3: #{_mean_mapper_impl.1} parent=1 // pred_check_branch
      %9 = sbr.rel (0) target = $region5
    $region4: #{_mean_mapper_impl.1} parent=1 // pred_region
      _
    $region5: #{_mean_mapper_impl.1} parent=1 // pred_fallthru
      _
    // Predicated region
    $region6: #{_mean_mapper_impl.1} parent=1 // pred_check
      _
    $region7: #{_mean_mapper_impl.1} parent=1 // pred_check_branch
      %11 = sbr.rel (0) target = $region9
    $region8: #{_mean_mapper_impl.1} parent=1 // pred_region
      _
    $region9: #{_mean_mapper_impl.1} parent=1 // pred_fallthru
      _
    %v12 = vld [vmem:[%s0] sm:$0xff]
    %v13 = vld [vmem:[%s0 + $0x8] sm:$0xff]
    %v14 = vld [vmem:[%s0 + $0x10] sm:$0xff]
    %v15 = vld [vmem:[%s1] sm:$0xff]
    %v16 = vld [vmem:[%s1 + $0x8] sm:$0xff]
    %v17 = vld [vmem:[%s1 + $0x10] sm:$0xff]
    %v18 = vld [vmem:[%s1 + $0x18] sm:$0xff]
    %v19 = vld [vmem:[%s1 + $0x20] sm:$0xff]
    %v20 = vld [vmem:[%s1 + $0x28] sm:$0xff]
    %v21 = vld [vmem:[%s1 + $0x30] sm:$0xff]
    %v22 = vld [vmem:[%s1 + $0x38] sm:$0xff]
    %v23 = vld [vmem:[%s1 + $0x40] sm:$0xff]
    %v24 = vld [vmem:[%s1 + $0x48] sm:$0xff]
    %v25 = vld [vmem:[%s1 + $0x50] sm:$0xff]
    %v26 = vld [vmem:[%s1 + $0x58] sm:$0xff]
    %v27 = vld [vmem:[%s1 + $0x60] sm:$0xff]
    %v28 = vld [vmem:[%s1 + $0x68] sm:$0xff]
    %v29 = vld [vmem:[%s1 + $0x70] sm:$0xff]
    %v30 = vld [vmem:[%s1 + $0x78] sm:$0xff]
    %v31 = vld [vmem:[%s1 + $0x80] sm:$0xff]
    %v32 = vld [vmem:[%s1 + $0x88] sm:$0xff]
    %v33 = vld [vmem:[%s1 + $0x90] sm:$0xff]
    %v34 = vld [vmem:[%s1 + $0x98] sm:$0xff]
    %v35 = vld [vmem:[%s1 + $0xa0] sm:$0xff]
    %v36 = vld [vmem:[%s1 + $0xa8] sm:$0xff]
    %v37 = vld [vmem:[%s1 + $0xb0] sm:$0xff]
    %v38 = vld [vmem:[%s1 + $0xb8] sm:$0xff]
    %v39 = vld [vmem:[%s1 + $0xc0] sm:$0xff]
    %v40 = vld [vmem:[%s1 + $0xc8] sm:$0xff]
    %v41 = vld [vmem:[%s1 + $0xd0] sm:$0xff]
    %v42 = vld [vmem:[%s1 + $0xd8] sm:$0xff]
    %v43 = vld [vmem:[%s1 + $0xe0] sm:$0xff]
    %v44 = vld [vmem:[%s1 + $0xe8] sm:$0xff]
    %v45 = vld [vmem:[%s1 + $0xf0] sm:$0xff]
    %v46 = vld [vmem:[%s1 + $0xf8] sm:$0xff]
    %v47 = vld [vmem:[%s1 + $0x100] sm:$0xff]
    %v48 = vld [vmem:[%s1 + $0x108] sm:$0xff]
    %v49 = vld [vmem:[%s1 + $0x110] sm:$0xff]
    %v50 = vld [vmem:[%s1 + $0x118] sm:$0xff]
    %vm51 = vcmask 261120
    %v53 = vsel %vm51, %v14, 0
    %55 = vmatpush.msra.mxu0 %v30
    %56 = vmatpush.msra.mxu0 %v29
    %57 = vmatpush.msra.mxu0 %v28
    %58 = vmatpush.msra.mxu0 %v27
    %59 = vmatpush.msra.mxu0 %v26
    %60 = vmatpush.msra.mxu0 %v25
    %61 = vmatpush.msra.mxu0 %v24
    %62 = vmatpush.msra.mxu0 %v23
    %63 = vmatpush.msra.mxu0 %v22
    %64 = vmatpush.msra.mxu0 %v21
    %65 = vmatpush.msra.mxu0 %v20
    %66 = vmatpush.msra.mxu0 %v19
    %67 = vmatpush.msra.mxu0 %v18
    %68 = vmatpush.msra.mxu0 %v17
    %69 = vmatpush.msra.mxu0 %v16
    %70 = vmatpush.msra.mxu0 %v15
    %71 = vmatmul.f32.gmra.mxu0 %v12
    %v72 = vpop.f32.mrf.mxu0
    %v73 = vadd.f32 0.0, %v72
    %74 = vdwg.mxu0
    %75 = vmatpush.msra.mxu0 %v46
    %76 = vmatpush.msra.mxu0 %v45
    %77 = vmatpush.msra.mxu0 %v44
    %78 = vmatpush.msra.mxu0 %v43
    %79 = vmatpush.msra.mxu0 %v42
    %80 = vmatpush.msra.mxu0 %v41
    %81 = vmatpush.msra.mxu0 %v40
    %82 = vmatpush.msra.mxu0 %v39
    %83 = vmatpush.msra.mxu0 %v38
    %84 = vmatpush.msra.mxu0 %v37
    %85 = vmatpush.msra.mxu0 %v36
    %86 = vmatpush.msra.mxu0 %v35
    %87 = vmatpush.msra.mxu0 %v34
    %88 = vmatpush.msra.mxu0 %v33
    %89 = vmatpush.msra.mxu0 %v32
    %90 = vmatpush.msra.mxu0 %v31
    %91 = vmatmul.f32.gmra.mxu0 %v13
    %v92 = vpop.f32.mrf.mxu0
    %v93 = vadd.f32 %v73, %v92
    %94 = vdwg.mxu0
    %95 = vmatpush.msra.mxu0 0.0
    %96 = vmatpush.msra.mxu0 0.0
    %97 = vmatpush.msra.mxu0 0.0
    %98 = vmatpush.msra.mxu0 0.0
    %99 = vmatpush.msra.mxu0 0.0
    %100 = vmatpush.msra.mxu0 0.0
    %101 = vmatpush.msra.mxu0 0.0
    %102 = vmatpush.msra.mxu0 0.0
    %103 = vmatpush.msra.mxu0 0.0
    %104 = vmatpush.msra.mxu0 0.0
    %105 = vmatpush.msra.mxu0 0.0
    %106 = vmatpush.msra.mxu0 0.0
    %107 = vmatpush.msra.mxu0 %v50
    %108 = vmatpush.msra.mxu0 %v49
    %109 = vmatpush.msra.mxu0 %v48
    %110 = vmatpush.msra.mxu0 %v47
    %111 = vmatmul.f32.gmra.mxu0 %v53
    %v112 = vpop.f32.mrf.mxu0
    %v113 = vadd.f32 %v93, %v112
    %114 = vdwg.mxu0
    %v115 = vmul.f32 %v113, 0.11111111
    %116 = vst.msk [vmem:[#allocation2] sm:$0xff] %vm51, %v115
    // Predicated region
    $region10: #{_mean_mapper_impl.1} parent=1 // pred_check
      _
    $region11: #{_mean_mapper_impl.1} parent=1 // pred_check_branch
      %118 = sbr.rel (0) target = $region13
    $region12: #{_mean_mapper_impl.1} parent=1 // pred_region
      %120 = vsyncadd [#allocation3], 0
      %s122 = sshll.u32 [#allocation2], 4
      %s123 = int_to_ptr.vmem [resolvable:$true] %s122
      %s124 = sshll.u32 %s2, 4
      %s125 = int_to_ptr.hbm [resolvable:$true] %s124
      %127 = dma.vmem_to_hbm [thread:$0]  %s123, 128, %s125, [#allocation3]
    $region13: #{_mean_mapper_impl.1} parent=1 // pred_fallthru
      _
    // Predicated region
    $region14: #{_mean_mapper_impl.1} parent=1 // pred_check
      _
    $region15: #{_mean_mapper_impl.1} parent=1 // pred_check_branch
      %129 = sbr.rel (0) target = $region17
    $region16: #{_mean_mapper_impl.1} parent=1 // pred_region
      %131 = dma.done [#allocation3], 128
    $region17: #{_mean_mapper_impl.1} parent=1 // pred_fallthru
      _
    %132 = vsyncpa [#allocation3], 1

</llo_original>
